<compile_context>
chip_gen: v5e
topology: v5e:2x2
jax: 0.10.0
libtpu: 0.0.40
codegen_flags: <defaults>
</compile_context>

<pallas_src>
import functools
import math

import jax
import jax.numpy as jnp
from jax.experimental import pallas as pl
from jax.experimental.pallas import tpu as pltpu


# -----------------------------------------------------------------------------
# Hardware-aware sizing
# -----------------------------------------------------------------------------
def _vmem_capacity_bytes():
    try:
        return int(pltpu.get_tpu_info().vmem_capacity_bytes)
    except Exception:
        return 64 * 1024 * 1024  # conservative fallback (v7x per-core VMEM)


_VMEM_CAP = _vmem_capacity_bytes()
# Scoped VMEM limit: ~46 MiB on 64 MiB parts (v7x), 64 MiB on 128 MiB parts.
if _VMEM_CAP <= 64 * 1024 * 1024:
    _VMEM_LIMIT = 46 * 1024 * 1024
else:
    _VMEM_LIMIT = 64 * 1024 * 1024
# Per-tile working-set budget.  The per_row estimates below already carry the x2
# double-buffer factor for pipelined operands, so halve only once; the other half
# is headroom for compiler temporaries / spills / internal scratch.
_TILE_BUDGET = _VMEM_LIMIT // 2


def _dw_compute_dtype():
    # bf16 VALU exists on v6e/v7x; keep f32 elementwise math on v5e.
    try:
        kind = jax.devices()[0].device_kind.lower()
    except Exception:
        return jnp.bfloat16
    if "v5 lite" in kind or "v5e" in kind or "v5lite" in kind:
        return jnp.float32
    return jnp.bfloat16


_DW_DTYPE = _dw_compute_dtype()


def _cdiv(a, b):
    return -(-a // b)


def _round_up(x, m):
    return (x + m - 1) // m * m


def _cparams(n_grid):
    return pltpu.CompilerParams(
        dimension_semantics=("parallel",) * n_grid,   # shard tiles across TCs (v7x)
        vmem_limit_bytes=_VMEM_LIMIT,
    )


def _const_spec(shape, index_map):
    # Operands whose block never changes across the grid: single-buffer them so
    # the freed VMEM goes to larger row tiles.
    try:
        return pl.BlockSpec(shape, index_map, pipeline_mode=pl.Buffered(1))
    except Exception:  # BlockSpec without pipeline_mode support
        return pl.BlockSpec(shape, index_map)


def _choose_row_tile(n_rows, per_row_bytes, fixed_bytes=0, cap=2048, split_single=False):
    """Row-tile size keeping the working set within the tile budget.

    Invariant relied upon everywhere: rows are independent (no cross-row
    reduction), so the ragged last block's masked edge writes are safe and no
    explicit row padding of activations is needed.
    """
    budget = max(_TILE_BUDGET - fixed_bytes, 256 * 1024)
    t = budget // max(per_row_bytes, 1)
    t = max(8, min(cap, (t // 8) * 8))
    if t >= n_rows:
        if split_single and n_rows >= 512:
            # Keep >=2 tiles so megacore (v7x) can split the call across cores.
            return _round_up(_cdiv(n_rows, 2), 8)
        return n_rows
    return t


# -----------------------------------------------------------------------------
# Pallas kernels
# -----------------------------------------------------------------------------
def _matmul_bn_act_kernel(x_ref, w_ref, s_ref, b_ref, o_ref, *, activation):
    # (TM, K) @ (K, Cout) on the MXU (bf16 inputs, f32 accumulate),
    # fused per-channel scale/bias (+ ReLU6), cast only at the store.
    acc = jnp.dot(x_ref[...], w_ref[...], preferred_element_type=jnp.float32)
    acc = acc * s_ref[...] + b_ref[...]
    if activation == "relu6":
        acc = jnp.clip(acc, 0.0, 6.0)
    o_ref[...] = acc.astype(o_ref.dtype)


def _matmul_bn_res_kernel(x_ref, w_ref, s_ref, b_ref, r_ref, o_ref, *, activation):
    # Same, with the inverted-residual skip add fused in (free under the matmul /
    # DMA; removes a full HBM round trip per residual block).
    acc = jnp.dot(x_ref[...], w_ref[...], preferred_element_type=jnp.float32)
    acc = acc * s_ref[...] + b_ref[...]
    if activation == "relu6":
        acc = jnp.clip(acc, 0.0, 6.0)
    acc = acc + r_ref[...].astype(jnp.float32)
    o_ref[...] = acc.astype(o_ref.dtype)


def _dw_s1_kernel(xp_hbm, w_ref, s_ref, b_ref, o_ref, xwin, sem, *, tr, w_out, cdt):
    # Stride-1 depthwise 3x3.  One haloed (tr+2, Wp, C) window is DMA'd from the
    # padded input in HBM; the 9 taps are in-kernel slices (no slab/im2col tensors
    # materialized in HBM).  Tap multiplies run in `cdt` (bf16 on v6e/v7x), the
    # cross-row accumulate + BN + ReLU6 in f32.
    n = pl.program_id(0)
    i = pl.program_id(1)
    cp = pltpu.make_async_copy(xp_hbm.at[n, pl.ds(i * tr, tr + 2)], xwin, sem.at[0])
    cp.start()
    cp.wait()
    wf = w_ref[...].astype(cdt)                      # (9, 1, 1, C)
    acc = None
    for ky in range(3):
        row = (xwin[ky:ky + tr, 0:w_out, :].astype(cdt) * wf[3 * ky + 0]
               + xwin[ky:ky + tr, 1:1 + w_out, :].astype(cdt) * wf[3 * ky + 1]
               + xwin[ky:ky + tr, 2:2 + w_out, :].astype(cdt) * wf[3 * ky + 2])
        row = row.astype(jnp.float32)
        acc = row if acc is None else acc + row
    acc = acc * s_ref[...] + b_ref[...]
    acc = jnp.clip(acc, 0.0, 6.0)
    o_ref[...] = acc.astype(o_ref.dtype)


def _dw_s2_kernel(x5_hbm, w_ref, s_ref, b_ref, o_ref, xwin, sem, *, tr, w_out, c, cdt):
    # Stride-2 depthwise 3x3 on the phase-folded input (N, Hp/2, 2, Wp/2, 2C):
    # folded row (h2, jh) = padded row 2*h2+jh, folded channel block j = padded
    # col 2*w2+j.  Output row r uses folded rows (r,0), (r,1), (r+1,0); output
    # col c uses (w2=c, j=0), (w2=c, j=1), (w2=c+1, j=0) -> all static slices.
    n = pl.program_id(0)
    i = pl.program_id(1)
    cp = pltpu.make_async_copy(x5_hbm.at[n, pl.ds(i * tr, tr + 1)], xwin, sem.at[0])
    cp.start()
    cp.wait()
    wf = w_ref[...].astype(cdt)                      # (9, 1, 1, C)
    acc = None
    for ky in range(3):
        if ky == 0:
            rs = xwin[0:tr, 0]                       # even input rows
        elif ky == 1:
            rs = xwin[0:tr, 1]                       # odd input rows
        else:
            rs = xwin[1:1 + tr, 0]                   # next even input rows
        rs = rs.astype(cdt)                          # (tr, Wp2, 2C)
        row = (rs[:, 0:w_out, 0:c] * wf[3 * ky + 0]
               + rs[:, 0:w_out, c:2 * c] * wf[3 * ky + 1]
               + rs[:, 1:1 + w_out, 0:c] * wf[3 * ky + 2])
        row = row.astype(jnp.float32)
        acc = row if acc is None else acc + row
    acc = acc * s_ref[...] + b_ref[...]
    acc = jnp.clip(acc, 0.0, 6.0)
    o_ref[...] = acc.astype(o_ref.dtype)


# -----------------------------------------------------------------------------
# pallas_call wrappers
# -----------------------------------------------------------------------------
def pallas_matmul_bn_act(x2d, w, scale, bias, activation=None, residual=None,
                         out_dtype=jnp.bfloat16):
    M, K = x2d.shape
    Cout = w.shape[1]
    in_b = jnp.dtype(x2d.dtype).itemsize
    out_b = jnp.dtype(out_dtype).itemsize
    res_b = 2 * Cout * jnp.dtype(residual.dtype).itemsize if residual is not None else 0
    per_row = 2 * K * in_b + 2 * Cout * out_b + res_b + 2 * Cout * 4
    fixed = 2 * K * Cout * jnp.dtype(w.dtype).itemsize + 4 * Cout * 4 + (1 << 20)
    tm = _choose_row_tile(M, per_row, fixed_bytes=fixed, split_single=True)
    grid = (_cdiv(M, tm),)   # ragged last tile handled by Pallas (no pad copies)

    in_specs = [
        pl.BlockSpec((tm, K), lambda i: (i, 0)),
        _const_spec((K, Cout), lambda i: (0, 0)),     # VMEM-resident, single-buffered
        _const_spec((1, Cout), lambda i: (0, 0)),
        _const_spec((1, Cout), lambda i: (0, 0)),
    ]
    args = [x2d, w, scale, bias]
    if residual is not None:
        in_specs.append(pl.BlockSpec((tm, Cout), lambda i: (i, 0)))
        args.append(residual)
        kernel = functools.partial(_matmul_bn_res_kernel, activation=activation)
    else:
        kernel = functools.partial(_matmul_bn_act_kernel, activation=activation)

    return pl.pallas_call(
        kernel,
        out_shape=jax.ShapeDtypeStruct((M, Cout), out_dtype),
        grid=grid,
        in_specs=in_specs,
        out_specs=pl.BlockSpec((tm, Cout), lambda i: (i, 0)),
        compiler_params=_cparams(1),
    )(*args)


def depthwise3x3_bn_relu6(x, w, scale, bias, stride):
    # x: (N, H, W, C) bf16, w: (3, 3, C) bf16, scale/bias: (1, C) f32
    N, H, W, C = x.shape
    Hout = (H + 2 - 3) // stride + 1
    Wout = (W + 2 - 3) // stride + 1
    w9 = w.reshape(9, 1, 1, C)
    s3 = scale.reshape(1, 1, C)
    b3 = bias.reshape(1, 1, C)
    cdt = _DW_DTYPE
    e = jnp.dtype(x.dtype).itemsize
    cdt_b = jnp.dtype(cdt).itemsize

    if stride == 1:
        Wp = W + 2
        per_row = (Wp * C * e                    # haloed window row (single-buffered scratch)
                   + 2 * Wout * C * e            # double-buffered output block
                   + Wout * C * (4 + 3 * cdt_b)) # f32 accumulator + live tap temporaries
        tr = _choose_row_tile(Hout, per_row)
        n_t = _cdiv(Hout, tr)
        # Extra bottom zero-rows keep the haloed DMA of the ragged last tile in
        # bounds; the extra outputs are masked by the out BlockSpec.
        xp = jnp.pad(x, ((0, 0), (1, 1 + n_t * tr - Hout), (1, 1), (0, 0)))
        xin = xp
        kernel = functools.partial(_dw_s1_kernel, tr=tr, w_out=Wout, cdt=cdt)
        win_shape = (tr + 2, Wp, C)
    else:  # stride == 2
        wp_pad = _round_up(W + 2, 2)
        wp2 = wp_pad // 2
        per_row = (2 * wp2 * 2 * C * e           # two folded window rows per output row
                   + 2 * Wout * C * e            # double-buffered output block
                   + wp2 * 2 * C * cdt_b         # unpacked row slab
                   + Wout * C * (4 + 3 * cdt_b))
        tr = _choose_row_tile(Hout, per_row)
        n_t = _cdiv(Hout, tr)
        hp_pad = max(_round_up(H + 2, 2), 2 * n_t * tr + 2)
        xp = jnp.pad(x, ((0, 0), (1, hp_pad - H - 1), (1, wp_pad - W - 1), (0, 0)))
        # Contiguity-preserving (free) reshape: fold even/odd row & column phases.
        xin = xp.reshape(N, hp_pad // 2, 2, wp2, 2 * C)
        kernel = functools.partial(_dw_s2_kernel, tr=tr, w_out=Wout, c=C, cdt=cdt)
        win_shape = (tr + 1, 2, wp2, 2 * C)

    grid = (N, n_t)
    y = pl.pallas_call(
        kernel,
        out_shape=jax.ShapeDtypeStruct((N, Hout, Wout, C), jnp.bfloat16),
        grid=grid,
        in_specs=[
            pl.BlockSpec(memory_space=pl.ANY),                     # padded input stays in HBM
            _const_spec((9, 1, 1, C), lambda n, i: (0, 0, 0, 0)),
            _const_spec((1, 1, C), lambda n, i: (0, 0, 0)),
            _const_spec((1, 1, C), lambda n, i: (0, 0, 0)),
        ],
        out_specs=pl.BlockSpec((None, tr, Wout, C), lambda n, i: (n, i, 0, 0)),
        scratch_shapes=[
            pltpu.VMEM(win_shape, x.dtype),
            pltpu.SemaphoreType.DMA((1,)),
        ],
        compiler_params=_cparams(2),
    )(xin, w9, s3, b3)
    return y


# -----------------------------------------------------------------------------
# Layer wrappers (glue: padding / im2col / reshapes only; compute is in kernels)
# -----------------------------------------------------------------------------
def conv3x3_bn_relu6(x, w, scale, bias, stride):
    # Stem conv (K=27 im2col) — a rounding error in FLOPs; im2col matmul is fine.
    N, H, W, Cin = x.shape
    Cout = w.shape[-1]
    xp = jnp.pad(x, ((0, 0), (1, 1), (1, 1), (0, 0)))
    Hout = (H + 2 - 3) // stride + 1
    Wout = (W + 2 - 3) // stride + 1
    taps = []
    for ky in range(3):
        for kx in range(3):
            taps.append(
                xp[:, ky:ky + (Hout - 1) * stride + 1:stride,
                      kx:kx + (Wout - 1) * stride + 1:stride, :]
            )
    patches = jnp.concatenate(taps, axis=-1).reshape(N * Hout * Wout, 9 * Cin)
    y = pallas_matmul_bn_act(patches, w.reshape(9 * Cin, Cout), scale, bias, "relu6")
    return y.reshape(N, Hout, Wout, Cout)


def pointwise_conv(x, w, scale, bias, activation, residual=None,
                   out_dtype=jnp.bfloat16):
    # 1x1 conv: x (N, H, W, Cin), w (Cin, Cout); optional fused residual add.
    N, H, W, Cin = x.shape
    Cout = w.shape[1]
    res2d = None if residual is None else residual.reshape(N * H * W, Cout)
    y = pallas_matmul_bn_act(x.reshape(N * H * W, Cin), w, scale, bias, activation,
                             residual=res2d, out_dtype=out_dtype)
    return y.reshape(N, H, W, Cout)


# -----------------------------------------------------------------------------
# Parameter construction (deterministic, MobileNetV2 shapes + detection head)
# -----------------------------------------------------------------------------
_MBV2_SETTINGS = [
    # t (expand), c (out channels), n (repeats), s (first stride)
    (1, 16, 1, 1),
    (6, 24, 2, 2),
    (6, 32, 3, 2),
    (6, 64, 4, 2),
    (6, 96, 3, 1),
    (6, 160, 3, 2),
    (6, 320, 1, 1),
]


def init_params(key, n_classes=9):
    state = {"key": key}

    def nk():
        state["key"], sub = jax.random.split(state["key"])
        return sub

    def conv_w(shape, fan_in):
        std = math.sqrt(2.0 / fan_in)
        return (jax.random.normal(nk(), shape, jnp.float32) * std).astype(jnp.bfloat16)

    def bn(c):
        # eval-mode BatchNorm folded to per-channel scale/bias (gamma=1, beta=0,
        # running_mean=0, running_var=1).
        scale = jnp.full((1, c), 1.0 / math.sqrt(1.0 + 1e-5), jnp.float32)
        bias = jnp.zeros((1, c), jnp.float32)
        return scale, bias

    params = {}
    s, b = bn(32)
    params["stem"] = dict(w=conv_w((3, 3, 3, 32), 27), scale=s, bias=b)

    blocks = []
    in_c = 32
    for t, c, n, st in _MBV2_SETTINGS:
        for i in range(n):
            stride = st if i == 0 else 1
            hidden = in_c * t
            blk = {"stride": stride, "use_res": (stride == 1 and in_c == c)}
            if t != 1:
                es, eb = bn(hidden)
                blk["expand"] = dict(w=conv_w((in_c, hidden), in_c), scale=es, bias=eb)
            else:
                blk["expand"] = None
            ds, db = bn(hidden)
            blk["dw"] = dict(w=conv_w((3, 3, hidden), 9), scale=ds, bias=db)
            ps, pb = bn(c)
            blk["project"] = dict(w=conv_w((hidden, c), hidden), scale=ps, bias=pb)
            blocks.append(blk)
            in_c = c
    params["blocks"] = blocks

    ls, lb = bn(1280)
    params["last"] = dict(w=conv_w((320, 1280), 320), scale=ls, bias=lb)

    # Detection head: Cout padded to 128 with zero weight/bias columns so the
    # kernel's store is lane-dense; padding is sliced off in detector_forward.
    n_out = 5 + n_classes
    n_out_pad = _round_up(n_out, 128)
    head_w = conv_w((1280, n_out), 1280)
    head_w = jnp.pad(head_w, ((0, 0), (0, n_out_pad - n_out)))
    head_b = (jax.random.normal(nk(), (1, n_out), jnp.float32) * 0.01).astype(jnp.float32)
    head_b = jnp.pad(head_b, ((0, 0), (0, n_out_pad - n_out)))
    params["head"] = dict(
        w=head_w,
        scale=jnp.ones((1, n_out_pad), jnp.float32),
        bias=head_b,
        n_out=n_out,
    )
    return params


# -----------------------------------------------------------------------------
# Detector forward
# -----------------------------------------------------------------------------
def detector_forward(inp_nchw, params):
    """inp: (N, 3, H, W) float32 (NCHW, like PyTorch). Returns (N, 5+n_classes, Hc, Wc)."""
    x = jnp.transpose(inp_nchw, (0, 2, 3, 1)).astype(jnp.bfloat16)  # -> NHWC, bf16

    stem = params["stem"]
    x = conv3x3_bn_relu6(x, stem["w"], stem["scale"], stem["bias"], stride=2)

    for blk in params["blocks"]:
        y = x
        if blk["expand"] is not None:
            e = blk["expand"]
            y = pointwise_conv(y, e["w"], e["scale"], e["bias"], "relu6")
        d = blk["dw"]
        y = depthwise3x3_bn_relu6(y, d["w"], d["scale"], d["bias"], blk["stride"])
        p = blk["project"]
        res = x if blk["use_res"] else None
        y = pointwise_conv(y, p["w"], p["scale"], p["bias"], None, residual=res)
        x = y

    last = params["last"]
    x = pointwise_conv(x, last["w"], last["scale"], last["bias"], "relu6")

    head = params["head"]
    x = pointwise_conv(x, head["w"], head["scale"], head["bias"], None,
                       out_dtype=jnp.float32)          # conv bias, no act, f32 out
    x = x[..., :head["n_out"]]                          # drop lane padding

    return jnp.transpose(x, (0, 3, 1, 2))  # back to NCHW


if __name__ == "__main__":
    key = jax.random.PRNGKey(0)
    pkey, xkey = jax.random.split(key)

    n_classes = 9
    params = init_params(pkey, n_classes=n_classes)

    # Small input consistent with the module (N, 3, H, W); 32x32 -> 1x1 output cells
    # (the real model uses 480x640 -> 15x20 cells; spatial size only changes Hc, Wc).
    inp = jax.random.normal(xkey, (2, 3, 32, 32), jnp.float32)

    out = detector_forward(inp, params)
    out = jax.block_until_ready(out)

    assert out.shape == (2, 5 + n_classes, 1, 1), out.shape
    assert out.dtype == jnp.float32
    print("KERNEL_OK")
</pallas_src>

<mosaic_0001>
module attributes {stable_mosaic.version = 11 : i64} {
  func.func @_matmul_bn_act_kernel(%arg0: i32, %arg1: memref<256x27xbf16, #tpu.memory_space<vmem>>, %arg2: memref<27x32xbf16, #tpu.memory_space<vmem>>, %arg3: memref<1x32xf32, #tpu.memory_space<vmem>>, %arg4: memref<1x32xf32, #tpu.memory_space<vmem>>, %arg5: memref<256x32xbf16, #tpu.memory_space<vmem>>) attributes {dimension_semantics = [#tpu.dimension_semantics<parallel>], iteration_bounds = array<i64: 2>, scalar_prefetch = 0 : i64, scratch_operands = 0 : i64, tpu.core_type = #tpu.core_type<tc>, window_params = [{transform_indices = @transform_0, window_bounds = array<i64: 256, 27>}, {pipeline_mode = #tpu.pipeline_mode<synchronous>, transform_indices = @transform_1, window_bounds = array<i64: 27, 32>}, {pipeline_mode = #tpu.pipeline_mode<synchronous>, transform_indices = @transform_2, window_bounds = array<i64: 1, 32>}, {pipeline_mode = #tpu.pipeline_mode<synchronous>, transform_indices = @transform_3, window_bounds = array<i64: 1, 32>}, {transform_indices = @transform_4, window_bounds = array<i64: 256, 32>}]} {
    %c0 = arith.constant 0 : index
    %c0_0 = arith.constant 0 : index
    %0 = vector.load %arg1[%c0, %c0_0] : memref<256x27xbf16, #tpu.memory_space<vmem>>, vector<256x27xbf16>
    %c0_1 = arith.constant 0 : index
    %c0_2 = arith.constant 0 : index
    %1 = vector.load %arg2[%c0_1, %c0_2] : memref<27x32xbf16, #tpu.memory_space<vmem>>, vector<27x32xbf16>
    %cst = arith.constant dense<0.000000e+00> : vector<256x32xf32>
    %2 = tpu.matmul %0, %1, %cst {dimension_numbers = #tpu.dot_dimension_numbers<[1], [0], [0], [1], [0, 0, 1, 1], [], []>} : vector<256x27xbf16>, vector<27x32xbf16>, vector<256x32xf32> -> vector<256x32xf32>
    %c0_3 = arith.constant 0 : index
    %c0_4 = arith.constant 0 : index
    %3 = vector.load %arg3[%c0_3, %c0_4] : memref<1x32xf32, #tpu.memory_space<vmem>>, vector<1x32xf32>
    %4 = vector.broadcast %3 : vector<1x32xf32> to vector<256x32xf32>
    %5 = arith.mulf %2, %4 : vector<256x32xf32>
    %c0_5 = arith.constant 0 : index
    %c0_6 = arith.constant 0 : index
    %6 = vector.load %arg4[%c0_5, %c0_6] : memref<1x32xf32, #tpu.memory_space<vmem>>, vector<1x32xf32>
    %7 = vector.broadcast %6 : vector<1x32xf32> to vector<256x32xf32>
    %8 = arith.addf %5, %7 : vector<256x32xf32>
    %cst_7 = arith.constant 0.000000e+00 : f32
    %cst_8 = arith.constant 6.000000e+00 : f32
    %9 = vector.broadcast %cst_7 : f32 to vector<256x32xf32>
    %10 = arith.maximumf %9, %8 : vector<256x32xf32>
    %11 = vector.broadcast %cst_8 : f32 to vector<256x32xf32>
    %12 = arith.minimumf %11, %10 : vector<256x32xf32>
    %13 = arith.truncf %12 : vector<256x32xf32> to vector<256x32xbf16>
    %c0_9 = arith.constant 0 : index
    %c0_10 = arith.constant 0 : index
    %14 = vector.load %arg5[%c0_9, %c0_10] : memref<256x32xbf16, #tpu.memory_space<vmem>>, vector<256x32xbf16>
    tpu.vector_store %arg5[%c0_9, %c0_10], %13 {strides = array<i32>} : memref<256x32xbf16, #tpu.memory_space<vmem>>, vector<256x32xbf16>,
    return
  }
  func.func @transform_0(%arg0: i32) -> (i32, i32) {
    %c0_i32 = arith.constant 0 : i32
    %c0_i32_0 = arith.constant 0 : i32
    return %arg0, %c0_i32 : i32, i32
  }
  func.func @transform_1(%arg0: i32) -> (i32, i32) {
    %c0_i32 = arith.constant 0 : i32
    %c0_i32_0 = arith.constant 0 : i32
    %c0_i32_1 = arith.constant 0 : i32
    return %c0_i32, %c0_i32_0 : i32, i32
  }
  func.func @transform_2(%arg0: i32) -> (i32, i32) {
    %c0_i32 = arith.constant 0 : i32
    %c0_i32_0 = arith.constant 0 : i32
    %c0_i32_1 = arith.constant 0 : i32
    return %c0_i32, %c0_i32_0 : i32, i32
  }
  func.func @transform_3(%arg0: i32) -> (i32, i32) {
    %c0_i32 = arith.constant 0 : i32
    %c0_i32_0 = arith.constant 0 : i32
    %c0_i32_1 = arith.constant 0 : i32
    return %c0_i32, %c0_i32_0 : i32, i32
  }
  func.func @transform_4(%arg0: i32) -> (i32, i32) {
    %c0_i32 = arith.constant 0 : i32
    %c0_i32_0 = arith.constant 0 : i32
    return %arg0, %c0_i32 : i32, i32
  }
}

</mosaic_0001>

<llo_original>
// kernel: tpu_custom_call.1
$region0: #{tpu_custom_call.1}
  #allocation0 [shape = 'u32[]', space=smem, size = 0x4, offset = 0x4, fixed_abs, tag = 'smem constant byte address 0x4 - core index']
  #allocation1 [shape = 'u32[72,128]{1,0:T(1,128)}', space=vmem, size = 0x9000, scoped, tag = 'internal scratch']
  %s0 = inlined_call_operand.vmem [shape: bf16[512,27], index: 0, kind: input, shape index: {}]
  %s1 = inlined_call_operand.vmem [shape: bf16[27,32], index: 1, kind: input, shape index: {}]
  %s2 = inlined_call_operand.vmem [shape: f32[1,32], index: 2, kind: input, shape index: {}]
  %s3 = inlined_call_operand.vmem [shape: f32[1,32], index: 3, kind: input, shape index: {}]
  %s4 = inlined_call_operand.vmem [shape: bf16[512,32], index: 4, kind: output, shape index: {}]
  %s5 = sld [smem:[#allocation0]]
  $region49: #{tpu_custom_call.1} parent=0
    _
  %s7 = ssub.s32 1, %s5
  %s8 = scalar_select 0, %s7, %s5
  loop: start=0, step=1, limit=4
  $region2: #{tpu_custom_call.1} parent=0 // loop_pre_header
    _
  $region3: #{tpu_custom_call.1} parent=0 // loop_header
    %s10 = sphi 0, %s14
    %p11 = scmp.ge.s32.totalorder %s10, 4
    %s20 = sphi 0, %s22
    %s23 = sphi 0, %s20
    %s24 = sphi 0, %s23
    %s40 = sphi 0, %s24
    %s44 = sphi 0, %s44
    %s46 = sphi 0, %s44
    %s47 = sphi 0, %s46
    %s61 = sphi 0, %s47
    %s65 = sphi 0, %s65
    %s67 = sphi 0, %s65
    %s68 = sphi 0, %s67
    %s82 = sphi 0, %s68
    %s86 = sphi 0, %s86
    %s88 = sphi 0, %s86
    %s89 = sphi 0, %s88
    %s103 = sphi 0, %s89
    %s109 = sphi 0, %s111
    %s112 = sphi 0, %s109
    %s113 = sphi 0, %s112
    %s129 = sphi 0, %s113
  $region4: #{tpu_custom_call.1} parent=0 // loop_header_branch
    %13 = sbr.rel (%p11) target = $region8
  $region5: #{tpu_custom_call.1} parent=0 // loop_body
    %s15 = ssub.s32 %s10, 1
    %s16 = ssub.s32 %s10, 2
    %s17 = sadd.s32 %s10, 1
    %s18 = ssub.s32 %s10, %s17
    %p19 = scmp.eq.s32.totalorder %s18, 0
    %s21 = sadd.s32 %s20, 1
    %s22 = scalar_select %p19, %s20, %s21
    %p25 = pneg %p19
    %p26 = scmp.eq.s32.totalorder %s10, 1
    %p27 = por %p25, %p26
    %p28 = scmp.ne.s32.totalorder %s20, %s23
    %p29 = scmp.eq.s32.totalorder %s10, 0
    %p30 = por %p28, %p29
    %p31 = scmp.ne.s32.totalorder %s20, %s23
    %p32 = scmp.eq.s32.totalorder %s15, 1
    %p33 = por %p31, %p32
    %p34 = scmp.ne.s32.totalorder %s23, %s24
    %p35 = scmp.eq.s32.totalorder %s15, 0
    %p36 = por %p34, %p35
    %p37 = scmp.ne.s32.totalorder %s23, %s24
    %p38 = scmp.eq.s32.totalorder %s16, 1
    %p39 = por %p37, %p38
    %p41 = scmp.ne.s32.totalorder %s24, %s40
    %p42 = scmp.eq.s32.totalorder %s16, 0
    %p43 = por %p41, %p42
    %s45 = sadd.s32 %s44, 1
    %p48 = scmp.eq.s32.totalorder %s10, 1
    %p49 = scmp.ne.s32.totalorder %s44, %s46
    %p50 = scmp.eq.s32.totalorder %s10, 0
    %p51 = por %p49, %p50
    %p52 = scmp.ne.s32.totalorder %s44, %s46
    %p53 = scmp.eq.s32.totalorder %s15, 1
    %p54 = por %p52, %p53
    %p55 = scmp.ne.s32.totalorder %s46, %s47
    %p56 = scmp.eq.s32.totalorder %s15, 0
    %p57 = por %p55, %p56
    %p58 = scmp.ne.s32.totalorder %s46, %s47
    %p59 = scmp.eq.s32.totalorder %s16, 1
    %p60 = por %p58, %p59
    %p62 = scmp.ne.s32.totalorder %s47, %s61
    %p63 = scmp.eq.s32.totalorder %s16, 0
    %p64 = por %p62, %p63
    %s66 = sadd.s32 %s65, 1
    %p69 = scmp.eq.s32.totalorder %s10, 1
    %p70 = scmp.ne.s32.totalorder %s65, %s67
    %p71 = scmp.eq.s32.totalorder %s10, 0
    %p72 = por %p70, %p71
    %p73 = scmp.ne.s32.totalorder %s65, %s67
    %p74 = scmp.eq.s32.totalorder %s15, 1
    %p75 = por %p73, %p74
    %p76 = scmp.ne.s32.totalorder %s67, %s68
    %p77 = scmp.eq.s32.totalorder %s15, 0
    %p78 = por %p76, %p77
    %p79 = scmp.ne.s32.totalorder %s67, %s68
    %p80 = scmp.eq.s32.totalorder %s16, 1
    %p81 = por %p79, %p80
    %p83 = scmp.ne.s32.totalorder %s68, %s82
    %p84 = scmp.eq.s32.totalorder %s16, 0
    %p85 = por %p83, %p84
    %s87 = sadd.s32 %s86, 1
    %p90 = scmp.eq.s32.totalorder %s10, 1
    %p91 = scmp.ne.s32.totalorder %s86, %s88
    %p92 = scmp.eq.s32.totalorder %s10, 0
    %p93 = por %p91, %p92
    %p94 = scmp.ne.s32.totalorder %s86, %s88
    %p95 = scmp.eq.s32.totalorder %s15, 1
    %p96 = por %p94, %p95
    %p97 = scmp.ne.s32.totalorder %s88, %s89
    %p98 = scmp.eq.s32.totalorder %s15, 0
    %p99 = por %p97, %p98
    %p100 = scmp.ne.s32.totalorder %s88, %s89
    %p101 = scmp.eq.s32.totalorder %s16, 1
    %p102 = por %p100, %p101
    %p104 = scmp.ne.s32.totalorder %s89, %s103
    %p105 = scmp.eq.s32.totalorder %s16, 0
    %p106 = por %p104, %p105
    %s107 = ssub.s32 %s10, %s17
    %p108 = scmp.eq.s32.totalorder %s107, 0
    %s110 = sadd.s32 %s109, 1
    %s111 = scalar_select %p108, %s109, %s110
    %p114 = pneg %p108
    %p115 = scmp.eq.s32.totalorder %s10, 1
    %p116 = por %p114, %p115
    %p117 = scmp.ne.s32.totalorder %s109, %s112
    %p118 = scmp.eq.s32.totalorder %s10, 0
    %p119 = por %p117, %p118
    %p120 = scmp.ne.s32.totalorder %s109, %s112
    %p121 = scmp.eq.s32.totalorder %s15, 1
    %p122 = por %p120, %p121
    %p123 = scmp.ne.s32.totalorder %s112, %s113
    %p124 = scmp.eq.s32.totalorder %s15, 0
    %p125 = por %p123, %p124
    %p126 = scmp.ne.s32.totalorder %s112, %s113
    %p127 = scmp.eq.s32.totalorder %s16, 1
    %p128 = por %p126, %p127
    %p130 = scmp.ne.s32.totalorder %s113, %s129
    %p131 = scmp.eq.s32.totalorder %s16, 0
    %p132 = por %p130, %p131
    %p133 = scmp.le.s32.totalorder 1, %s10
    %p134 = scmp.lt.s32.totalorder %s10, 3
    %p135 = pnand %p133, %p134
    %p136 = pneg %p135
    // Predicated region
    $region9: #{tpu_custom_call.1} parent=5 // pred_check
      _
    $region10: #{tpu_custom_call.1} parent=5 // pred_check_branch
      %138 = sbr.rel (%p135) target = $region12
    $region11: #{tpu_custom_call.1} parent=5 // pred_region
      %s139 = ssub.s32 %s10, 1
      // Predicated region
      $region13: #{tpu_custom_call.1} parent=11 // pred_check
        %p140 = pneg %p57
      $region14: #{tpu_custom_call.1} parent=11 // pred_check_branch
        %142 = sbr.rel (%p140) target = $region16
      $region15: #{tpu_custom_call.1} parent=11 // pred_region
        _
      $region16: #{tpu_custom_call.1} parent=11 // pred_fallthru
        _
      // Predicated region
      $region17: #{tpu_custom_call.1} parent=11 // pred_check
        %p143 = pneg %p78
      $region18: #{tpu_custom_call.1} parent=11 // pred_check_branch
        %145 = sbr.rel (%p143) target = $region20
      $region19: #{tpu_custom_call.1} parent=11 // pred_region
        _
      $region20: #{tpu_custom_call.1} parent=11 // pred_fallthru
        _
      // Predicated region
      $region21: #{tpu_custom_call.1} parent=11 // pred_check
        %p146 = pneg %p99
      $region22: #{tpu_custom_call.1} parent=11 // pred_check_branch
        %148 = sbr.rel (%p146) target = $region24
      $region23: #{tpu_custom_call.1} parent=11 // pred_region
        _
      $region24: #{tpu_custom_call.1} parent=11 // pred_fallthru
        _
    $region12: #{tpu_custom_call.1} parent=5 // pred_fallthru
      _
    %p149 = scmp.lt.s32.totalorder %s10, 2
    // Predicated region
    $region25: #{tpu_custom_call.1} parent=5 // pred_check
      %p150 = pneg %p149
    $region26: #{tpu_custom_call.1} parent=5 // pred_check_branch
      %152 = sbr.rel (%p150) target = $region28
    $region27: #{tpu_custom_call.1} parent=5 // pred_region
      // Predicated region
      $region29: #{tpu_custom_call.1} parent=27 // pred_check
        %p153 = pneg %p30
      $region30: #{tpu_custom_call.1} parent=27 // pred_check_branch
        %155 = sbr.rel (%p153) target = $region32
      $region31: #{tpu_custom_call.1} parent=27 // pred_region
        %s156 = smul.u32 32, %s10
        %p157 = scmp.lt.s32.totalorder %s156, 63
        %s158 = scalar_select %p157, %s156, 63
        %s159 = smul.addr %s158, 4
        %s160 = scalar_lea.vmem %s0, %s159
        %s161 = smul.u32 32, %s10
      $region32: #{tpu_custom_call.1} parent=27 // pred_fallthru
        _
    $region28: #{tpu_custom_call.1} parent=5 // pred_fallthru
      _
    %p162 = scmp.le.s32.totalorder 1, %s10
    %p163 = scmp.lt.s32.totalorder %s10, 3
    %p164 = pnand %p162, %p163
    %p165 = pneg %p164
    // Predicated region
    $region33: #{tpu_custom_call.1} parent=5 // pred_check
      _
    $region34: #{tpu_custom_call.1} parent=5 // pred_check_branch
      %167 = sbr.rel (%p164) target = $region36
    $region35: #{tpu_custom_call.1} parent=5 // pred_region
      %s168 = ssub.s32 %s10, 1
      %s169 = smul.u32 32, %s15
      %p170 = scmp.lt.s32.totalorder %s169, 63
      %s171 = scalar_select %p170, %s169, 63
      %s172 = smul.addr %s171, 4
      %s173 = scalar_lea.vmem %s0, %s172
      %p174 = pneg %p36
      %p175 = pneg %p33
      %p176 = pneg %p57
      %p177 = pneg %p54
      %p178 = pneg %p78
      %p179 = pneg %p75
      %p180 = pneg %p99
      %p181 = pneg %p96
      %p182 = pneg %p125
      %p183 = pneg %p122
      %s184 = smul.u32 32, %s15
      %p185 = scmp.lt.s32.totalorder %s184, 63
      %s186 = scalar_select %p185, %s184, 63
      %s187 = smul.addr %s186, 4
      %s188 = scalar_lea.vmem %s4, %s187
      %s189 = smul.u32 32, %s15
      %p190 = scmp.lt.s32.totalorder %s189, 63
      %s191 = scalar_select %p190, %s189, 63
      %s192 = smul.addr %s191, 4
      %s193 = scalar_lea.vmem %s0, %s192
      %s194 = smul.u32 32, %s15
      %s195 = smul.u32 32, %s15
      %p196 = scmp.lt.s32.totalorder %s195, 63
      %s197 = scalar_select %p196, %s195, 63
      %s198 = smul.addr %s197, 4
      %s199 = scalar_lea.vmem %s4, %s198
      %s200 = smul.u32 32, %s15
      %v202 = vld [vmem:[%s193] sm:$0xf]
      %v203 = vld [vmem:[%s193 + $0x4] sm:$0xf]
      %v204 = vld [vmem:[%s193 + $0x8] sm:$0xf]
      %v205 = vld [vmem:[%s193 + $0xc] sm:$0xf]
      %v206 = vld [vmem:[%s193 + $0x10] sm:$0xf]
      %v207 = vld [vmem:[%s193 + $0x14] sm:$0xf]
      %v208 = vld [vmem:[%s193 + $0x18] sm:$0xf]
      %v209 = vld [vmem:[%s193 + $0x1c] sm:$0xf]
      %v210 = vld [vmem:[%s193 + $0x20] sm:$0xf]
      %v211 = vld [vmem:[%s193 + $0x24] sm:$0xf]
      %v212 = vld [vmem:[%s193 + $0x28] sm:$0xf]
      %v213 = vld [vmem:[%s193 + $0x2c] sm:$0xf]
      %v214 = vld [vmem:[%s193 + $0x30] sm:$0xf]
      %v215 = vld [vmem:[%s193 + $0x34] sm:$0xf]
      %v216 = vld [vmem:[%s193 + $0x38] sm:$0xf]
      %v217 = vld [vmem:[%s193 + $0x3c] sm:$0xf]
      %v218 = vld [vmem:[%s193 + $0x40] sm:$0xf]
      %v219 = vld [vmem:[%s193 + $0x44] sm:$0xf]
      %v220 = vld [vmem:[%s193 + $0x48] sm:$0xf]
      %v221 = vld [vmem:[%s193 + $0x4c] sm:$0xf]
      %v222 = vld [vmem:[%s193 + $0x50] sm:$0xf]
      %v223 = vld [vmem:[%s193 + $0x54] sm:$0xf]
      %v224 = vld [vmem:[%s193 + $0x58] sm:$0xf]
      %v225 = vld [vmem:[%s193 + $0x5c] sm:$0xf]
      %v226 = vld [vmem:[%s193 + $0x60] sm:$0xf]
      %v227 = vld [vmem:[%s193 + $0x64] sm:$0xf]
      %v228 = vld [vmem:[%s193 + $0x68] sm:$0xf]
      %v229 = vld [vmem:[%s193 + $0x6c] sm:$0xf]
      %v230 = vld [vmem:[%s193 + $0x70] sm:$0xf]
      %v231 = vld [vmem:[%s193 + $0x74] sm:$0xf]
      %v232 = vld [vmem:[%s193 + $0x78] sm:$0xf]
      %v233 = vld [vmem:[%s193 + $0x7c] sm:$0xf]
      %v234 = vld [vmem:[%s1] sm:$0xf]
      %v235 = vld [vmem:[%s1 + $0x4] sm:$0xf]
      %v236 = vld [vmem:[%s1 + $0x8] sm:$0xf]
      %v237 = vld [vmem:[%s1 + $0xc] sm:$0x3]
      %v270 = vunpack.c.l.b16 %v202
      %v271 = vunpack.c.l.b16 %v203
      %v272 = vunpack.c.l.b16 %v204
      %v273 = vunpack.c.l.b16 %v205
      %v274 = vunpack.c.l.b16 %v206
      %v275 = vunpack.c.l.b16 %v207
      %v276 = vunpack.c.l.b16 %v208
      %v277 = vunpack.c.l.b16 %v209
      %v278 = vunpack.c.l.b16 %v210
      %v279 = vunpack.c.l.b16 %v211
      %v280 = vunpack.c.l.b16 %v212
      %v281 = vunpack.c.l.b16 %v213
      %v282 = vunpack.c.l.b16 %v214
      %v283 = vunpack.c.l.b16 %v215
      %v284 = vunpack.c.l.b16 %v216
      %v285 = vunpack.c.l.b16 %v217
      %v286 = vunpack.c.l.b16 %v218
      %v287 = vunpack.c.l.b16 %v219
      %v288 = vunpack.c.l.b16 %v220
      %v289 = vunpack.c.l.b16 %v221
      %v290 = vunpack.c.l.b16 %v222
      %v291 = vunpack.c.l.b16 %v223
      %v292 = vunpack.c.l.b16 %v224
      %v293 = vunpack.c.l.b16 %v225
      %v294 = vunpack.c.l.b16 %v226
      %v295 = vunpack.c.l.b16 %v227
      %v296 = vunpack.c.l.b16 %v228
      %v297 = vunpack.c.l.b16 %v229
      %v298 = vunpack.c.l.b16 %v230
      %v299 = vunpack.c.l.b16 %v231
      %v300 = vunpack.c.l.b16 %v232
      %v301 = vunpack.c.l.b16 %v233
      %v302 = vpack.c.b16 %v271, %v270
      %v303 = vpack.c.b16 %v273, %v272
      %v304 = vpack.c.b16 %v275, %v274
      %v305 = vpack.c.b16 %v277, %v276
      %v306 = vpack.c.b16 %v279, %v278
      %v307 = vpack.c.b16 %v281, %v280
      %v308 = vpack.c.b16 %v283, %v282
      %v309 = vpack.c.b16 %v285, %v284
      %v310 = vpack.c.b16 %v287, %v286
      %v311 = vpack.c.b16 %v289, %v288
      %v312 = vpack.c.b16 %v291, %v290
      %v313 = vpack.c.b16 %v293, %v292
      %v314 = vpack.c.b16 %v295, %v294
      %v315 = vpack.c.b16 %v297, %v296
      %v316 = vpack.c.b16 %v299, %v298
      %v317 = vpack.c.b16 %v301, %v300
      %v322 = vunpack.c.l.b16 %v234
      %v323 = vunpack.c.l.b16 %v235
      %v324 = vunpack.c.l.b16 %v236
      %v325 = vunpack.c.l.b16 %v237
      %v326 = vpack.c.b16 %v323, %v322
      %v327 = vpack.c.b16 %v325, %v324
      %vm329 = vcmask 220160
      %v331 = vsel %vm329, %v302, 0
      %v334 = vsel %vm329, %v303, 0
      %v337 = vsel %vm329, %v304, 0
      %v340 = vsel %vm329, %v305, 0
      %v343 = vsel %vm329, %v306, 0
      %v346 = vsel %vm329, %v307, 0
      %v349 = vsel %vm329, %v308, 0
      %v352 = vsel %vm329, %v309, 0
      %v355 = vsel %vm329, %v310, 0
      %v358 = vsel %vm329, %v311, 0
      %v361 = vsel %vm329, %v312, 0
      %v364 = vsel %vm329, %v313, 0
      %v367 = vsel %vm329, %v314, 0
      %v370 = vsel %vm329, %v315, 0
      %v373 = vsel %vm329, %v316, 0
      %v376 = vsel %vm329, %v317, 0
      %vm378 = vcmask 1044480
      %vm379 = vcmask 1045504
      %v380 = vsel %vm378, 4294967295, 65535
      %v381 = vsel %vm379, %v380, 0
      %v383 = vand.u32 %v327, %v381
      %385 = vmatpush.bf16.msra.mxu0 0
      %386 = vmatpush.bf16.msra.mxu0 0
      %387 = vmatpush.bf16.msra.mxu0 0
      %388 = vmatpush.bf16.msra.mxu0 0
      %389 = vmatpush.bf16.msra.mxu0 0
      %390 = vmatpush.bf16.msra.mxu0 0
      %391 = vmatpush.bf16.msra.mxu0 %v383
      %392 = vmatpush.bf16.msra.mxu0 %v326
      %393 = vmatmul.bf16.gmra.mxu0 %v331
      %v394 = vpop.f32.mrf.mxu0
      %v395 = vadd.f32 0.0, %v394
      %v396 = vpop.f32.mrf.mxu0
      %v397 = vadd.f32 0.0, %v396
      %398 = vmatmul.bf16.gmra.mxu0 %v334
      %v399 = vpop.f32.mrf.mxu0
      %v400 = vadd.f32 0.0, %v399
      %v401 = vpop.f32.mrf.mxu0
      %v402 = vadd.f32 0.0, %v401
      %403 = vmatmul.bf16.gmra.mxu0 %v337
      %v404 = vpop.f32.mrf.mxu0
      %v405 = vadd.f32 0.0, %v404
      %v406 = vpop.f32.mrf.mxu0
      %v407 = vadd.f32 0.0, %v406
      %408 = vmatmul.bf16.gmra.mxu0 %v340
      %v409 = vpop.f32.mrf.mxu0
      %v410 = vadd.f32 0.0, %v409
      %v411 = vpop.f32.mrf.mxu0
      %v412 = vadd.f32 0.0, %v411
      %413 = vmatmul.bf16.gmra.mxu0 %v343
      %v414 = vpop.f32.mrf.mxu0
      %v415 = vadd.f32 0.0, %v414
      %v416 = vpop.f32.mrf.mxu0
      %v417 = vadd.f32 0.0, %v416
      %418 = vmatmul.bf16.gmra.mxu0 %v346
      %v419 = vpop.f32.mrf.mxu0
      %v420 = vadd.f32 0.0, %v419
      %v421 = vpop.f32.mrf.mxu0
      %v422 = vadd.f32 0.0, %v421
      %423 = vmatmul.bf16.gmra.mxu0 %v349
      %v424 = vpop.f32.mrf.mxu0
      %v425 = vadd.f32 0.0, %v424
      %v426 = vpop.f32.mrf.mxu0
      %v427 = vadd.f32 0.0, %v426
      %428 = vmatmul.bf16.gmra.mxu0 %v352
      %v429 = vpop.f32.mrf.mxu0
      %v430 = vadd.f32 0.0, %v429
      %v431 = vpop.f32.mrf.mxu0
      %v432 = vadd.f32 0.0, %v431
      %433 = vmatmul.bf16.gmra.mxu0 %v355
      %v434 = vpop.f32.mrf.mxu0
      %v435 = vadd.f32 0.0, %v434
      %v436 = vpop.f32.mrf.mxu0
      %v437 = vadd.f32 0.0, %v436
      %438 = vmatmul.bf16.gmra.mxu0 %v358
      %v439 = vpop.f32.mrf.mxu0
      %v440 = vadd.f32 0.0, %v439
      %v441 = vpop.f32.mrf.mxu0
      %v442 = vadd.f32 0.0, %v441
      %443 = vmatmul.bf16.gmra.mxu0 %v361
      %v444 = vpop.f32.mrf.mxu0
      %v445 = vadd.f32 0.0, %v444
      %v446 = vpop.f32.mrf.mxu0
      %v447 = vadd.f32 0.0, %v446
      %448 = vmatmul.bf16.gmra.mxu0 %v364
      %v449 = vpop.f32.mrf.mxu0
      %v450 = vadd.f32 0.0, %v449
      %v451 = vpop.f32.mrf.mxu0
      %v452 = vadd.f32 0.0, %v451
      %453 = vmatmul.bf16.gmra.mxu0 %v367
      %v454 = vpop.f32.mrf.mxu0
      %v455 = vadd.f32 0.0, %v454
      %v456 = vpop.f32.mrf.mxu0
      %v457 = vadd.f32 0.0, %v456
      %458 = vmatmul.bf16.gmra.mxu0 %v370
      %v459 = vpop.f32.mrf.mxu0
      %v460 = vadd.f32 0.0, %v459
      %v461 = vpop.f32.mrf.mxu0
      %v462 = vadd.f32 0.0, %v461
      %463 = vmatmul.bf16.gmra.mxu0 %v373
      %v464 = vpop.f32.mrf.mxu0
      %v465 = vadd.f32 0.0, %v464
      %v466 = vpop.f32.mrf.mxu0
      %v467 = vadd.f32 0.0, %v466
      %468 = vmatmul.bf16.gmra.mxu0 %v376
      %v469 = vpop.f32.mrf.mxu0
      %v470 = vadd.f32 0.0, %v469
      %v471 = vpop.f32.mrf.mxu0
      %v472 = vadd.f32 0.0, %v471
      %473 = vdwg.mxu0
      %v474 = vld [vmem:[%s2] sm:$0x1]
      %v476 = vperm.slane %v474, 0
      %v478 = vmul.f32 %v395, %v476
      %v479 = vmul.f32 %v397, %v476
      %v480 = vmul.f32 %v400, %v476
      %v481 = vmul.f32 %v402, %v476
      %v482 = vmul.f32 %v405, %v476
      %v483 = vmul.f32 %v407, %v476
      %v484 = vmul.f32 %v410, %v476
      %v485 = vmul.f32 %v412, %v476
      %v486 = vmul.f32 %v415, %v476
      %v487 = vmul.f32 %v417, %v476
      %v488 = vmul.f32 %v420, %v476
      %v489 = vmul.f32 %v422, %v476
      %v490 = vmul.f32 %v425, %v476
      %v491 = vmul.f32 %v427, %v476
      %v492 = vmul.f32 %v430, %v476
      %v493 = vmul.f32 %v432, %v476
      %v494 = vmul.f32 %v435, %v476
      %v495 = vmul.f32 %v437, %v476
      %v496 = vmul.f32 %v440, %v476
      %v497 = vmul.f32 %v442, %v476
      %v498 = vmul.f32 %v445, %v476
      %v499 = vmul.f32 %v447, %v476
      %v500 = vmul.f32 %v450, %v476
      %v501 = vmul.f32 %v452, %v476
      %v502 = vmul.f32 %v455, %v476
      %v503 = vmul.f32 %v457, %v476
      %v504 = vmul.f32 %v460, %v476
      %v505 = vmul.f32 %v462, %v476
      %v506 = vmul.f32 %v465, %v476
      %v507 = vmul.f32 %v467, %v476
      %v508 = vmul.f32 %v470, %v476
      %v509 = vmul.f32 %v472, %v476
      %v510 = vld [vmem:[%s3] sm:$0x1]
      %v512 = vperm.slane %v510, 0
      %v514 = vadd.f32 %v478, %v512
      %v515 = vadd.f32 %v479, %v512
      %v516 = vadd.f32 %v480, %v512
      %v517 = vadd.f32 %v481, %v512
      %v518 = vadd.f32 %v482, %v512
      %v519 = vadd.f32 %v483, %v512
      %v520 = vadd.f32 %v484, %v512
      %v521 = vadd.f32 %v485, %v512
      %v522 = vadd.f32 %v486, %v512
      %v523 = vadd.f32 %v487, %v512
      %v524 = vadd.f32 %v488, %v512
      %v525 = vadd.f32 %v489, %v512
      %v526 = vadd.f32 %v490, %v512
      %v527 = vadd.f32 %v491, %v512
      %v528 = vadd.f32 %v492, %v512
      %v529 = vadd.f32 %v493, %v512
      %v530 = vadd.f32 %v494, %v512
      %v531 = vadd.f32 %v495, %v512
      %v532 = vadd.f32 %v496, %v512
      %v533 = vadd.f32 %v497, %v512
      %v534 = vadd.f32 %v498, %v512
      %v535 = vadd.f32 %v499, %v512
      %v536 = vadd.f32 %v500, %v512
      %v537 = vadd.f32 %v501, %v512
      %v538 = vadd.f32 %v502, %v512
      %v539 = vadd.f32 %v503, %v512
      %v540 = vadd.f32 %v504, %v512
      %v541 = vadd.f32 %v505, %v512
      %v542 = vadd.f32 %v506, %v512
      %v543 = vadd.f32 %v507, %v512
      %v544 = vadd.f32 %v508, %v512
      %v545 = vadd.f32 %v509, %v512
      %v546 = vmax.f32 %v514, 0.0
      %v547 = vmax.f32 %v515, 0.0
      %v548 = vmax.f32 %v516, 0.0
      %v549 = vmax.f32 %v517, 0.0
      %v550 = vmax.f32 %v518, 0.0
      %v551 = vmax.f32 %v519, 0.0
      %v552 = vmax.f32 %v520, 0.0
      %v553 = vmax.f32 %v521, 0.0
      %v554 = vmax.f32 %v522, 0.0
      %v555 = vmax.f32 %v523, 0.0
      %v556 = vmax.f32 %v524, 0.0
      %v557 = vmax.f32 %v525, 0.0
      %v558 = vmax.f32 %v526, 0.0
      %v559 = vmax.f32 %v527, 0.0
      %v560 = vmax.f32 %v528, 0.0
      %v561 = vmax.f32 %v529, 0.0
      %v562 = vmax.f32 %v530, 0.0
      %v563 = vmax.f32 %v531, 0.0
      %v564 = vmax.f32 %v532, 0.0
      %v565 = vmax.f32 %v533, 0.0
      %v566 = vmax.f32 %v534, 0.0
      %v567 = vmax.f32 %v535, 0.0
      %v568 = vmax.f32 %v536, 0.0
      %v569 = vmax.f32 %v537, 0.0
      %v570 = vmax.f32 %v538, 0.0
      %v571 = vmax.f32 %v539, 0.0
      %v572 = vmax.f32 %v540, 0.0
      %v573 = vmax.f32 %v541, 0.0
      %v574 = vmax.f32 %v542, 0.0
      %v575 = vmax.f32 %v543, 0.0
      %v576 = vmax.f32 %v544, 0.0
      %v577 = vmax.f32 %v545, 0.0
      %v578 = vmin.f32 %v546, 6.0
      %v579 = vmin.f32 %v547, 6.0
      %v580 = vmin.f32 %v548, 6.0
      %v581 = vmin.f32 %v549, 6.0
      %v582 = vmin.f32 %v550, 6.0
      %v583 = vmin.f32 %v551, 6.0
      %v584 = vmin.f32 %v552, 6.0
      %v585 = vmin.f32 %v553, 6.0
      %v586 = vmin.f32 %v554, 6.0
      %v587 = vmin.f32 %v555, 6.0
      %v588 = vmin.f32 %v556, 6.0
      %v589 = vmin.f32 %v557, 6.0
      %v590 = vmin.f32 %v558, 6.0
      %v591 = vmin.f32 %v559, 6.0
      %v592 = vmin.f32 %v560, 6.0
      %v593 = vmin.f32 %v561, 6.0
      %v594 = vmin.f32 %v562, 6.0
      %v595 = vmin.f32 %v563, 6.0
      %v596 = vmin.f32 %v564, 6.0
      %v597 = vmin.f32 %v565, 6.0
      %v598 = vmin.f32 %v566, 6.0
      %v599 = vmin.f32 %v567, 6.0
      %v600 = vmin.f32 %v568, 6.0
      %v601 = vmin.f32 %v569, 6.0
      %v602 = vmin.f32 %v570, 6.0
      %v603 = vmin.f32 %v571, 6.0
      %v604 = vmin.f32 %v572, 6.0
      %v605 = vmin.f32 %v573, 6.0
      %v606 = vmin.f32 %v574, 6.0
      %v607 = vmin.f32 %v575, 6.0
      %v608 = vmin.f32 %v576, 6.0
      %v609 = vmin.f32 %v577, 6.0
      %v610 = vpack.c.bf16 %v578, %v578
      %v611 = vpack.c.bf16 %v579, %v579
      %v612 = vpack.c.bf16 %v580, %v580
      %v613 = vpack.c.bf16 %v581, %v581
      %v614 = vpack.c.bf16 %v582, %v582
      %v615 = vpack.c.bf16 %v583, %v583
      %v616 = vpack.c.bf16 %v584, %v584
      %v617 = vpack.c.bf16 %v585, %v585
      %v618 = vpack.c.bf16 %v586, %v586
      %v619 = vpack.c.bf16 %v587, %v587
      %v620 = vpack.c.bf16 %v588, %v588
      %v621 = vpack.c.bf16 %v589, %v589
      %v622 = vpack.c.bf16 %v590, %v590
      %v623 = vpack.c.bf16 %v591, %v591
      %v624 = vpack.c.bf16 %v592, %v592
      %v625 = vpack.c.bf16 %v593, %v593
      %v626 = vpack.c.bf16 %v594, %v594
      %v627 = vpack.c.bf16 %v595, %v595
      %v628 = vpack.c.bf16 %v596, %v596
      %v629 = vpack.c.bf16 %v597, %v597
      %v630 = vpack.c.bf16 %v598, %v598
      %v631 = vpack.c.bf16 %v599, %v599
      %v632 = vpack.c.bf16 %v600, %v600
      %v633 = vpack.c.bf16 %v601, %v601
      %v634 = vpack.c.bf16 %v602, %v602
      %v635 = vpack.c.bf16 %v603, %v603
      %v636 = vpack.c.bf16 %v604, %v604
      %v637 = vpack.c.bf16 %v605, %v605
      %v638 = vpack.c.bf16 %v606, %v606
      %v639 = vpack.c.bf16 %v607, %v607
      %v640 = vpack.c.bf16 %v608, %v608
      %v641 = vpack.c.bf16 %v609, %v609
      %vm642 = vcmask 257024
      %643 = vst.msk [vmem:[%s199] sm:$0xf] %vm642, %v610
      %644 = vst.msk [vmem:[%s199 + $0x4] sm:$0xf] %vm642, %v611
      %645 = vst.msk [vmem:[%s199 + $0x8] sm:$0xf] %vm642, %v612
      %646 = vst.msk [vmem:[%s199 + $0xc] sm:$0xf] %vm642, %v613
      %647 = vst.msk [vmem:[%s199 + $0x10] sm:$0xf] %vm642, %v614
      %648 = vst.msk [vmem:[%s199 + $0x14] sm:$0xf] %vm642, %v615
      %649 = vst.msk [vmem:[%s199 + $0x18] sm:$0xf] %vm642, %v616
      %650 = vst.msk [vmem:[%s199 + $0x1c] sm:$0xf] %vm642, %v617
      %651 = vst.msk [vmem:[%s199 + $0x20] sm:$0xf] %vm642, %v618
      %652 = vst.msk [vmem:[%s199 + $0x24] sm:$0xf] %vm642, %v619
      %653 = vst.msk [vmem:[%s199 + $0x28] sm:$0xf] %vm642, %v620
      %654 = vst.msk [vmem:[%s199 + $0x2c] sm:$0xf] %vm642, %v621
      %655 = vst.msk [vmem:[%s199 + $0x30] sm:$0xf] %vm642, %v622
      %656 = vst.msk [vmem:[%s199 + $0x34] sm:$0xf] %vm642, %v623
      %657 = vst.msk [vmem:[%s199 + $0x38] sm:$0xf] %vm642, %v624
      %658 = vst.msk [vmem:[%s199 + $0x3c] sm:$0xf] %vm642, %v625
      %659 = vst.msk [vmem:[%s199 + $0x40] sm:$0xf] %vm642, %v626
      %660 = vst.msk [vmem:[%s199 + $0x44] sm:$0xf] %vm642, %v627
      %661 = vst.msk [vmem:[%s199 + $0x48] sm:$0xf] %vm642, %v628
      %662 = vst.msk [vmem:[%s199 + $0x4c] sm:$0xf] %vm642, %v629
      %663 = vst.msk [vmem:[%s199 + $0x50] sm:$0xf] %vm642, %v630
      %664 = vst.msk [vmem:[%s199 + $0x54] sm:$0xf] %vm642, %v631
      %665 = vst.msk [vmem:[%s199 + $0x58] sm:$0xf] %vm642, %v632
      %666 = vst.msk [vmem:[%s199 + $0x5c] sm:$0xf] %vm642, %v633
      %667 = vst.msk [vmem:[%s199 + $0x60] sm:$0xf] %vm642, %v634
      %668 = vst.msk [vmem:[%s199 + $0x64] sm:$0xf] %vm642, %v635
      %669 = vst.msk [vmem:[%s199 + $0x68] sm:$0xf] %vm642, %v636
      %670 = vst.msk [vmem:[%s199 + $0x6c] sm:$0xf] %vm642, %v637
      %671 = vst.msk [vmem:[%s199 + $0x70] sm:$0xf] %vm642, %v638
      %672 = vst.msk [vmem:[%s199 + $0x74] sm:$0xf] %vm642, %v639
      %673 = vst.msk [vmem:[%s199 + $0x78] sm:$0xf] %vm642, %v640
      %674 = vst.msk [vmem:[%s199 + $0x7c] sm:$0xf] %vm642, %v641
      %s675 = smul.u32 32, %s15
      %p676 = scmp.lt.s32.totalorder %s675, 63
      %s677 = scalar_select %p676, %s675, 63
      %s678 = smul.addr %s677, 4
      %s679 = scalar_lea.vmem %s4, %s678
      // Predicated region
      $region37: #{tpu_custom_call.1} parent=35 // pred_check
        %p680 = pneg %p122
      $region38: #{tpu_custom_call.1} parent=35 // pred_check_branch
        %682 = sbr.rel (%p680) target = $region40
      $region39: #{tpu_custom_call.1} parent=35 // pred_region
        %s683 = smul.u32 32, %s15
      $region40: #{tpu_custom_call.1} parent=35 // pred_fallthru
        _
    $region36: #{tpu_custom_call.1} parent=5 // pred_fallthru
      _
    %p684 = scmp.le.s32.totalorder 2, %s10
    // Predicated region
    $region41: #{tpu_custom_call.1} parent=5 // pred_check
      %p685 = pneg %p684
    $region42: #{tpu_custom_call.1} parent=5 // pred_check_branch
      %687 = sbr.rel (%p685) target = $region44
    $region43: #{tpu_custom_call.1} parent=5 // pred_region
      %s688 = ssub.s32 %s10, 2
      // Predicated region
      $region45: #{tpu_custom_call.1} parent=43 // pred_check
        %p689 = pneg %p128
      $region46: #{tpu_custom_call.1} parent=43 // pred_check_branch
        %691 = sbr.rel (%p689) target = $region48
      $region47: #{tpu_custom_call.1} parent=43 // pred_region
        %s692 = smul.u32 32, %s16
        %p693 = scmp.lt.s32.totalorder %s692, 63
        %s694 = scalar_select %p693, %s692, 63
        %s695 = smul.addr %s694, 4
        %s696 = scalar_lea.vmem %s4, %s695
      $region48: #{tpu_custom_call.1} parent=43 // pred_fallthru
        _
    $region44: #{tpu_custom_call.1} parent=5 // pred_fallthru
      _
  $region6: #{tpu_custom_call.1} parent=0 // loop_footer
    %s14 = sadd.s32 1, %s10
  $region7: #{tpu_custom_call.1} parent=0 // loop_footer_branch
    %9 = sbr.rel target = $region3
  $region8: #{tpu_custom_call.1} parent=0 // loop_exit
    _

</llo_original>
